<compile_context>
chip_gen: v7x
topology: tpu7x:2x2x1
jax: 0.10.0
libtpu: 0.0.40
codegen_flags: <defaults>
</compile_context>

<pallas_src>
import jax
import jax.numpy as jnp
from jax.experimental import pallas as pl
from jax.experimental.pallas import tpu as pltpu


_MIN_PALLAS_OUT_BYTES = 1 * 1024 * 1024     # below ~1 MiB of output, let XLA copy
_TARGET_OUT_TILE_BYTES = 3 * 1024 * 1024    # ~3 MiB output per grid step (~6 MiB traffic)


def _round_down(x, m):
    return (x // m) * m


def _round_up(x, m):
    return ((x + m - 1) // m) * m


def _vmem_budget_and_limit():
    """Generation-aware (live-tile budget, vmem_limit_bytes)."""
    try:
        info = pltpu.get_tpu_info()
        cap = getattr(info, "vmem_capacity_bytes", 64 * 1024 * 1024)
    except Exception:  # unknown part: assume the smallest VMEM (v7x, 64 MiB)
        cap = 64 * 1024 * 1024
    if cap >= 100 * 1024 * 1024:            # v5e / v6e: 128 MiB physical VMEM
        return 24 * 1024 * 1024, 64 * 1024 * 1024
    return 12 * 1024 * 1024, 32 * 1024 * 1024   # v7x: 64 MiB physical VMEM


def _concat_lastdim_kernel(x1_ref, x2_ref, o_ref):
    # x1_ref: (T, H1), x2_ref: (T, H2), o_ref: (T, H1 + H2)
    # H1 is guaranteed to be a multiple of 128 lanes by the dispatch guard, so
    # both assignments are plain lane-aligned VMEM stores (no masked vst path).
    h1 = x1_ref.shape[-1]
    o_ref[:, :h1] = x1_ref[...]
    o_ref[:, h1:] = x2_ref[...]


def _pick_tile_rows(n_rows, h_total, itemsize, vmem_budget):
    """Row tile that (a) is a multiple of the sublane packing, (b) moves
    ~_TARGET_OUT_TILE_BYTES of output per step, (c) keeps double-buffered
    inputs + output under the VMEM budget, and (d) yields >=2 grid steps
    whenever the row count allows a sublane-aligned split."""
    sub = 8 * max(1, 4 // max(1, itemsize))           # 8 f32 / 16 bf16 / 32 int8
    row_bytes_out = h_total * itemsize
    # Bytes-based tile floor (replaces the old fixed 1024-row cap).
    target = max(sub, _round_down(_TARGET_OUT_TILE_BYTES // row_bytes_out, sub))
    # VMEM cap: double-buffered inputs (H1+H2=H) + output (H) per row.
    # (May slightly exceed the stated budget when rounded up to `sub`; that is
    #  still well under vmem_limit_bytes.)
    max_rows = max(sub, _round_down(vmem_budget // (4 * row_bytes_out), sub))
    tile = min(target, max_rows)

    if tile >= n_rows:
        # Would collapse to grid=(1,). Force a 2-way split so ("parallel",)
        # can use both TensorCores on v7x — unless the row count is too small
        # to split along sublane packing.
        half_up = _round_up(-(-n_rows // 2), sub)
        tile = half_up if half_up < n_rows else n_rows
    return tile


def _concatenate_two_pallas(x1, x2):
    S, B, H1 = x1.shape
    H2 = x2.shape[2]
    H = H1 + H2
    R = S * B
    dtype = x1.dtype
    itemsize = dtype.itemsize

    # Free row-major view in HBM; lifts the (8,128) rule off the tiny B dim.
    x1_2d = x1.reshape(R, H1)
    x2_2d = x2.reshape(R, H2)

    vmem_budget, vmem_limit = _vmem_budget_and_limit()
    tile_r = _pick_tile_rows(R, H, itemsize, vmem_budget)
    grid = (pl.cdiv(R, tile_r),)
    total_bytes = 2 * R * H * itemsize                 # read + write every element

    out_2d = pl.pallas_call(
        _concat_lastdim_kernel,
        out_shape=jax.ShapeDtypeStruct((R, H), dtype),
        grid=grid,
        in_specs=[
            pl.BlockSpec((tile_r, H1), lambda i: (i, 0)),
            pl.BlockSpec((tile_r, H2), lambda i: (i, 0)),
        ],
        out_specs=pl.BlockSpec((tile_r, H), lambda i: (i, 0)),
        compiler_params=pltpu.CompilerParams(
            dimension_semantics=("parallel",),
            vmem_limit_bytes=vmem_limit,
        ),
        cost_estimate=pl.CostEstimate(
            flops=0, transcendentals=0, bytes_accessed=total_bytes),
    )(x1_2d, x2_2d)

    return out_2d.reshape(S, B, H)


def concatenate_two(x1, x2, *, force_pallas=False):
    """Equivalent of torch.cat((x1, x2), dim=2) for 3-D inputs (S, B, H*)."""
    assert x1.ndim == 3 and x2.ndim == 3
    assert x1.shape[0] == x2.shape[0] and x1.shape[1] == x2.shape[1]
    assert x1.dtype == x2.dtype

    S, B, H1 = x1.shape
    H2 = x2.shape[2]
    H = H1 + H2
    out_bytes = S * B * H * x1.dtype.itemsize

    # Lane-alignment guard: a split point not on a 128-lane boundary would turn
    # every x2 store into a masked vst + XLU shift; XLA's emitter handles those
    # shapes fine, so bail out regardless of force_pallas.
    lane_aligned = (H1 % 128 == 0) and (H2 % 128 == 0)
    if not lane_aligned:
        return jnp.concatenate((x1, x2), axis=2)

    if not force_pallas and out_bytes < _MIN_PALLAS_OUT_BYTES:
        # Tiny copy: pallas_call launch + per-step overhead dominates.
        return jnp.concatenate((x1, x2), axis=2)

    return _concatenate_two_pallas(x1, x2)


if __name__ == "__main__":
    key = jax.random.PRNGKey(0)
    k1, k2, k3, k4, k5, k6 = jax.random.split(key, 6)

    # 1) Small GNMT-like shape with 128-aligned halves (seq=8, batch=2,
    #    hidden=128 per half) — force the Pallas path; the >=2-step rule gives
    #    grid=(2,) even at this size, exercising the kernel + partial tiling.
    x1 = jax.random.normal(k1, (8, 2, 128), dtype=jnp.float32)
    x2 = jax.random.normal(k2, (8, 2, 128), dtype=jnp.float32)
    out = jax.block_until_ready(concatenate_two(x1, x2, force_pallas=True))
    assert out.shape == (8, 2, 256)
    assert jnp.array_equal(out, jnp.concatenate((x1, x2), axis=2))

    # 2) Tiny, non-128-aligned hidden (the original H=32 case): the alignment
    #    guard routes this to jnp.concatenate — semantics preserved.
    y1 = jax.random.normal(k3, (8, 2, 32), dtype=jnp.float32)
    y2 = jax.random.normal(k4, (8, 2, 32), dtype=jnp.float32)
    out2 = jax.block_until_ready(concatenate_two(y1, y2, force_pallas=True))
    assert out2.shape == (8, 2, 64)
    assert jnp.array_equal(out2, jnp.concatenate((y1, y2), axis=2))

    # 3) Larger shape (2 MiB output) that takes the Pallas path naturally and
    #    exercises the multi-step, double-buffered grid (R=2048 rows, grid=(2,)).
    z1 = jax.random.normal(k5, (128, 16, 128), dtype=jnp.float32)
    z2 = jax.random.normal(k6, (128, 16, 128), dtype=jnp.float32)
    out3 = jax.block_until_ready(concatenate_two(z1, z2))
    assert out3.shape == (128, 16, 256)
    assert jnp.array_equal(out3, jnp.concatenate((z1, z2), axis=2))

    print("KERNEL_OK")
</pallas_src>

<mosaic_0001>
module attributes {stable_mosaic.version = 11 : i64} {
  func.func @_concat_lastdim_kernel(%arg0: i32, %arg1: memref<8x128xf32, #tpu.memory_space<vmem>>, %arg2: memref<8x128xf32, #tpu.memory_space<vmem>>, %arg3: memref<8x256xf32, #tpu.memory_space<vmem>>) attributes {dimension_semantics = [#tpu.dimension_semantics<parallel>], iteration_bounds = array<i64: 2>, scalar_prefetch = 0 : i64, scratch_operands = 0 : i64, tpu.core_type = #tpu.core_type<tc>, window_params = [{transform_indices = @transform_0, window_bounds = array<i64: 8, 128>}, {transform_indices = @transform_1, window_bounds = array<i64: 8, 128>}, {transform_indices = @transform_2, window_bounds = array<i64: 8, 256>}]} {
    %c0 = arith.constant 0 : index
    %c0_0 = arith.constant 0 : index
    %0 = vector.load %arg1[%c0, %c0_0] : memref<8x128xf32, #tpu.memory_space<vmem>>, vector<8x128xf32>
    %c0_1 = arith.constant 0 : index
    %c0_2 = arith.constant 0 : index
    %1 = vector.load %arg3[%c0_1, %c0_2] : memref<8x256xf32, #tpu.memory_space<vmem>>, vector<8x128xf32>
    tpu.vector_store %arg3[%c0_1, %c0_2], %0 {strides = array<i32>} : memref<8x256xf32, #tpu.memory_space<vmem>>, vector<8x128xf32>,
    %c0_3 = arith.constant 0 : index
    %c0_4 = arith.constant 0 : index
    %2 = vector.load %arg2[%c0_3, %c0_4] : memref<8x128xf32, #tpu.memory_space<vmem>>, vector<8x128xf32>
    %c0_5 = arith.constant 0 : index
    %c128 = arith.constant 128 : index
    %3 = vector.load %arg3[%c0_5, %c128] : memref<8x256xf32, #tpu.memory_space<vmem>>, vector<8x128xf32>
    tpu.vector_store %arg3[%c0_5, %c128], %2 {strides = array<i32>} : memref<8x256xf32, #tpu.memory_space<vmem>>, vector<8x128xf32>,
    return
  }
  func.func @transform_0(%arg0: i32) -> (i32, i32) {
    %c0_i32 = arith.constant 0 : i32
    %c0_i32_0 = arith.constant 0 : i32
    return %arg0, %c0_i32 : i32, i32
  }
  func.func @transform_1(%arg0: i32) -> (i32, i32) {
    %c0_i32 = arith.constant 0 : i32
    %c0_i32_0 = arith.constant 0 : i32
    return %arg0, %c0_i32 : i32, i32
  }
  func.func @transform_2(%arg0: i32) -> (i32, i32) {
    %c0_i32 = arith.constant 0 : i32
    %c0_i32_0 = arith.constant 0 : i32
    return %arg0, %c0_i32 : i32, i32
  }
}

</mosaic_0001>

<llo_original>
// kernel: tpu_custom_call.1
$region0: #{tpu_custom_call.1}
  #allocation0 [shape = 'u32[]', space=smem, size = 0x4, offset = 0x4, fixed_abs, tag = 'smem constant byte address 0x4 - core index']
  #allocation1 [shape = 'u32[144,128]{1,0:T(1,128)}', space=vmem, size = 0x12000, scoped, tag = 'internal scratch']
  %s0 = inlined_call_operand.hbm [shape: f32[16,128], index: 0, kind: input, shape index: {}]
  %s1 = inlined_call_operand.hbm [shape: f32[16,128], index: 1, kind: input, shape index: {}]
  %s2 = inlined_call_operand.hbm [shape: f32[16,256], index: 2, kind: output, shape index: {}]
  %s3 = sld [smem:[#allocation0]]
  $region49: #{tpu_custom_call.1} parent=0
    _
  %s5 = ssub.s32 1, %s3
  %s6 = scalar_select 0, %s5, %s3
  $region1: #{tpu_custom_call.1} parent=0
    #allocation2 [shape = 'u8[8192]{0}', space=vmem, size = 0x2000, scoped, tag = 'input window, operand 0']
    #allocation3 [shape = 's32[2]{0}', space=sflag, size = 0x8, scoped, tag = 'scoped memory for tpu_custom_call.1']
    #allocation4 [shape = 's32[2]{0}', space=sflag, size = 0x8, scoped, tag = 'scoped memory for tpu_custom_call.1']
    #allocation5 [shape = 'u8[8192]{0}', space=vmem, size = 0x2000, scoped, tag = 'input window, operand 1']
    #allocation6 [shape = 's32[2]{0}', space=sflag, size = 0x8, scoped, tag = 'scoped memory for tpu_custom_call.1']
    #allocation7 [shape = 'u8[16384]{0}', space=vmem, size = 0x4000, scoped, tag = 'output window, operand 0']
    %7 = vsyncpa [#allocation3], 0
    %s8 = scalar_lea.sflag [#allocation3], 1
    %9 = vsyncpa %s8, 0
    %10 = vsyncpa [#allocation6], 0
    %s11 = scalar_lea.sflag [#allocation6], 1
    %12 = vsyncpa %s11, 0
    %13 = vsyncpa [#allocation4], 0
    %s14 = scalar_lea.sflag [#allocation4], 1
    %15 = vsyncpa %s14, 0
    loop: start=0, step=1, limit=4
    $region2: #{tpu_custom_call.1} parent=1 // loop_pre_header
      _
    $region3: #{tpu_custom_call.1} parent=1 // loop_header
      %s17 = sphi 0, %s21
      %p18 = scmp.ge.s32.totalorder %s17, 4
      %s27 = sphi 0, %s29
      %s30 = sphi 0, %s27
      %s31 = sphi 0, %s30
      %s47 = sphi 0, %s31
      %s53 = sphi 0, %s55
      %s56 = sphi 0, %s53
      %s57 = sphi 0, %s56
      %s73 = sphi 0, %s57
      %s79 = sphi 0, %s81
      %s82 = sphi 0, %s79
      %s83 = sphi 0, %s82
      %s99 = sphi 0, %s83
    $region4: #{tpu_custom_call.1} parent=1 // loop_header_branch
      %20 = sbr.rel (%p18) target = $region8
    $region5: #{tpu_custom_call.1} parent=1 // loop_body
      %s22 = ssub.s32 %s17, 1
      %s23 = ssub.s32 %s17, 2
      %s24 = sadd.s32 %s17, 1
      %s25 = ssub.s32 %s17, %s24
      %p26 = scmp.eq.s32.totalorder %s25, 0
      %s28 = sadd.s32 %s27, 1
      %s29 = scalar_select %p26, %s27, %s28
      %p32 = pneg %p26
      %p33 = scmp.eq.s32.totalorder %s17, 1
      %p34 = por %p32, %p33
      %p35 = scmp.ne.s32.totalorder %s27, %s30
      %p36 = scmp.eq.s32.totalorder %s17, 0
      %p37 = por %p35, %p36
      %p38 = scmp.ne.s32.totalorder %s27, %s30
      %p39 = scmp.eq.s32.totalorder %s22, 1
      %p40 = por %p38, %p39
      %p41 = scmp.ne.s32.totalorder %s30, %s31
      %p42 = scmp.eq.s32.totalorder %s22, 0
      %p43 = por %p41, %p42
      %p44 = scmp.ne.s32.totalorder %s30, %s31
      %p45 = scmp.eq.s32.totalorder %s23, 1
      %p46 = por %p44, %p45
      %p48 = scmp.ne.s32.totalorder %s31, %s47
      %p49 = scmp.eq.s32.totalorder %s23, 0
      %p50 = por %p48, %p49
      %s51 = ssub.s32 %s17, %s24
      %p52 = scmp.eq.s32.totalorder %s51, 0
      %s54 = sadd.s32 %s53, 1
      %s55 = scalar_select %p52, %s53, %s54
      %p58 = pneg %p52
      %p59 = scmp.eq.s32.totalorder %s17, 1
      %p60 = por %p58, %p59
      %p61 = scmp.ne.s32.totalorder %s53, %s56
      %p62 = scmp.eq.s32.totalorder %s17, 0
      %p63 = por %p61, %p62
      %p64 = scmp.ne.s32.totalorder %s53, %s56
      %p65 = scmp.eq.s32.totalorder %s22, 1
      %p66 = por %p64, %p65
      %p67 = scmp.ne.s32.totalorder %s56, %s57
      %p68 = scmp.eq.s32.totalorder %s22, 0
      %p69 = por %p67, %p68
      %p70 = scmp.ne.s32.totalorder %s56, %s57
      %p71 = scmp.eq.s32.totalorder %s23, 1
      %p72 = por %p70, %p71
      %p74 = scmp.ne.s32.totalorder %s57, %s73
      %p75 = scmp.eq.s32.totalorder %s23, 0
      %p76 = por %p74, %p75
      %s77 = ssub.s32 %s17, %s24
      %p78 = scmp.eq.s32.totalorder %s77, 0
      %s80 = sadd.s32 %s79, 1
      %s81 = scalar_select %p78, %s79, %s80
      %p84 = pneg %p78
      %p85 = scmp.eq.s32.totalorder %s17, 1
      %p86 = por %p84, %p85
      %p87 = scmp.ne.s32.totalorder %s79, %s82
      %p88 = scmp.eq.s32.totalorder %s17, 0
      %p89 = por %p87, %p88
      %p90 = scmp.ne.s32.totalorder %s79, %s82
      %p91 = scmp.eq.s32.totalorder %s22, 1
      %p92 = por %p90, %p91
      %p93 = scmp.ne.s32.totalorder %s82, %s83
      %p94 = scmp.eq.s32.totalorder %s22, 0
      %p95 = por %p93, %p94
      %p96 = scmp.ne.s32.totalorder %s82, %s83
      %p97 = scmp.eq.s32.totalorder %s23, 1
      %p98 = por %p96, %p97
      %p100 = scmp.ne.s32.totalorder %s83, %s99
      %p101 = scmp.eq.s32.totalorder %s23, 0
      %p102 = por %p100, %p101
      %p103 = scmp.le.s32.totalorder 1, %s17
      %p104 = scmp.lt.s32.totalorder %s17, 3
      %p105 = pnand %p103, %p104
      %p106 = pneg %p105
      // Predicated region
      $region9: #{tpu_custom_call.1} parent=5 // pred_check
        _
      $region10: #{tpu_custom_call.1} parent=5 // pred_check_branch
        %108 = sbr.rel (%p105) target = $region12
      $region11: #{tpu_custom_call.1} parent=5 // pred_region
        %s109 = ssub.s32 %s17, 1
      $region12: #{tpu_custom_call.1} parent=5 // pred_fallthru
        _
      %p110 = scmp.lt.s32.totalorder %s17, 2
      // Predicated region
      $region13: #{tpu_custom_call.1} parent=5 // pred_check
        %p111 = pneg %p110
      $region14: #{tpu_custom_call.1} parent=5 // pred_check_branch
        %113 = sbr.rel (%p111) target = $region16
      $region15: #{tpu_custom_call.1} parent=5 // pred_region
        // Predicated region
        $region17: #{tpu_custom_call.1} parent=15 // pred_check
          %p114 = pneg %p37
        $region18: #{tpu_custom_call.1} parent=15 // pred_check_branch
          %116 = sbr.rel (%p114) target = $region20
        $region19: #{tpu_custom_call.1} parent=15 // pred_region
          %s117 = sand.u32 %s27, 1
          %s118 = scalar_lea.sflag [#allocation3], %s117
          %s119 = sand.u32 %s27, 1
          %s120 = smul.addr %s119, 8
          %s121 = scalar_lea.vmem [#allocation2], %s120
          %s123 = ssub.s32 128, 128
          %124 = vsyncadd %s118, %s123
          %s125 = smul.addr %s17, 128
          %s126 = scalar_lea.hbm %s0, %s125
          %s128 = sshll.u32 %s121, 4
          %s129 = int_to_ptr.vmem [resolvable:$true] %s128
          %131 = dma.hbm_to_vmem [thread:$0]  %s126, 128, %s129, %s118
        $region20: #{tpu_custom_call.1} parent=15 // pred_fallthru
          _
        // Predicated region
        $region21: #{tpu_custom_call.1} parent=15 // pred_check
          %p132 = pneg %p63
        $region22: #{tpu_custom_call.1} parent=15 // pred_check_branch
          %134 = sbr.rel (%p132) target = $region24
        $region23: #{tpu_custom_call.1} parent=15 // pred_region
          %s135 = sand.u32 %s53, 1
          %s136 = scalar_lea.sflag [#allocation6], %s135
          %s137 = sand.u32 %s53, 1
          %s138 = smul.addr %s137, 8
          %s139 = scalar_lea.vmem [#allocation5], %s138
          %s141 = ssub.s32 128, 128
          %142 = vsyncadd %s136, %s141
          %s143 = smul.addr %s17, 128
          %s144 = scalar_lea.hbm %s1, %s143
          %s146 = sshll.u32 %s139, 4
          %s147 = int_to_ptr.vmem [resolvable:$true] %s146
          %149 = dma.hbm_to_vmem [thread:$0]  %s144, 128, %s147, %s136
        $region24: #{tpu_custom_call.1} parent=15 // pred_fallthru
          _
      $region16: #{tpu_custom_call.1} parent=5 // pred_fallthru
        _
      %p150 = scmp.le.s32.totalorder 1, %s17
      %p151 = scmp.lt.s32.totalorder %s17, 3
      %p152 = pnand %p150, %p151
      %p153 = pneg %p152
      // Predicated region
      $region25: #{tpu_custom_call.1} parent=5 // pred_check
        _
      $region26: #{tpu_custom_call.1} parent=5 // pred_check_branch
        %155 = sbr.rel (%p152) target = $region28
      $region27: #{tpu_custom_call.1} parent=5 // pred_region
        %s156 = ssub.s32 %s17, 1
        %s157 = sand.u32 %s30, 1
        %s158 = scalar_lea.sflag [#allocation3], %s157
        %s159 = sand.u32 %s30, 1
        %s160 = smul.addr %s159, 8
        %s161 = scalar_lea.vmem [#allocation2], %s160
        // Predicated region
        $region29: #{tpu_custom_call.1} parent=27 // pred_check
          %p162 = pneg %p43
        $region30: #{tpu_custom_call.1} parent=27 // pred_check_branch
          %164 = sbr.rel (%p162) target = $region32
        $region31: #{tpu_custom_call.1} parent=27 // pred_region
          %165 = dma.done %s158, 128
        $region32: #{tpu_custom_call.1} parent=27 // pred_fallthru
          _
        %s166 = sand.u32 %s56, 1
        %s167 = scalar_lea.sflag [#allocation6], %s166
        %s168 = sand.u32 %s56, 1
        %s169 = smul.addr %s168, 8
        %s170 = scalar_lea.vmem [#allocation5], %s169
        // Predicated region
        $region33: #{tpu_custom_call.1} parent=27 // pred_check
          %p171 = pneg %p69
        $region34: #{tpu_custom_call.1} parent=27 // pred_check_branch
          %173 = sbr.rel (%p171) target = $region36
        $region35: #{tpu_custom_call.1} parent=27 // pred_region
          %174 = dma.done %s167, 128
        $region36: #{tpu_custom_call.1} parent=27 // pred_fallthru
          _
        %s175 = sand.u32 %s30, 1
        %s176 = scalar_lea.sflag [#allocation3], %s175
        %s177 = sand.u32 %s30, 1
        %s178 = smul.addr %s177, 8
        %s179 = scalar_lea.vmem [#allocation2], %s178
        %p180 = pneg %p43
        %p181 = pneg %p40
        %s182 = sand.u32 %s56, 1
        %s183 = scalar_lea.sflag [#allocation6], %s182
        %s184 = sand.u32 %s56, 1
        %s185 = smul.addr %s184, 8
        %s186 = scalar_lea.vmem [#allocation5], %s185
        %p187 = pneg %p69
        %p188 = pneg %p66
        %p189 = pneg %p95
        %p190 = pneg %p92
        %s191 = sand.u32 %s82, 1
        %s192 = scalar_lea.sflag [#allocation4], %s191
        %s193 = sand.u32 %s82, 1
        %s194 = smul.addr %s193, 16
        %s195 = scalar_lea.vmem [#allocation7], %s194
        %v196 = vld [vmem:[%s161] sm:$0xff]
        %197 = vst [vmem:[%s195] sm:$0xff] %v196
        %v198 = vld [vmem:[%s170] sm:$0xff]
        %199 = vst [vmem:[%s195 + $0x8] sm:$0xff] %v198
        %s200 = sand.u32 %s82, 1
        %s201 = scalar_lea.sflag [#allocation4], %s200
        %s202 = sand.u32 %s82, 1
        %s203 = smul.addr %s202, 16
        %s204 = scalar_lea.vmem [#allocation7], %s203
        // Predicated region
        $region37: #{tpu_custom_call.1} parent=27 // pred_check
          %p205 = pneg %p92
        $region38: #{tpu_custom_call.1} parent=27 // pred_check_branch
          %207 = sbr.rel (%p205) target = $region40
        $region39: #{tpu_custom_call.1} parent=27 // pred_region
          %s209 = ssub.s32 256, 256
          %210 = vsyncadd %s201, %s209
          %s211 = smul.addr %s22, 2
          %s212 = smul.addr %s211, 128
          %s213 = scalar_lea.hbm %s2, %s212
          %s215 = sshll.u32 %s204, 4
          %s216 = int_to_ptr.vmem [resolvable:$true] %s215
          %218 = dma.vmem_to_hbm [thread:$0]  %s216, 256, %s213, %s201
        $region40: #{tpu_custom_call.1} parent=27 // pred_fallthru
          _
      $region28: #{tpu_custom_call.1} parent=5 // pred_fallthru
        _
      %p219 = scmp.le.s32.totalorder 2, %s17
      // Predicated region
      $region41: #{tpu_custom_call.1} parent=5 // pred_check
        %p220 = pneg %p219
      $region42: #{tpu_custom_call.1} parent=5 // pred_check_branch
        %222 = sbr.rel (%p220) target = $region44
      $region43: #{tpu_custom_call.1} parent=5 // pred_region
        %s223 = ssub.s32 %s17, 2
        // Predicated region
        $region45: #{tpu_custom_call.1} parent=43 // pred_check
          %p224 = pneg %p98
        $region46: #{tpu_custom_call.1} parent=43 // pred_check_branch
          %226 = sbr.rel (%p224) target = $region48
        $region47: #{tpu_custom_call.1} parent=43 // pred_region
          %s227 = sand.u32 %s83, 1
          %s228 = scalar_lea.sflag [#allocation4], %s227
          %s229 = sand.u32 %s83, 1
          %s230 = smul.addr %s229, 16
          %s231 = scalar_lea.vmem [#allocation7], %s230
          %232 = dma.done %s228, 256
        $region48: #{tpu_custom_call.1} parent=43 // pred_fallthru
          _
      $region44: #{tpu_custom_call.1} parent=5 // pred_fallthru
        _
    $region6: #{tpu_custom_call.1} parent=1 // loop_footer
      %s21 = sadd.s32 1, %s17
    $region7: #{tpu_custom_call.1} parent=1 // loop_footer_branch
      %16 = sbr.rel target = $region3
    $region8: #{tpu_custom_call.1} parent=1 // loop_exit
      _
    %233 = vsyncpa [#allocation3], 1
    %s234 = scalar_lea.sflag [#allocation3], 1
    %235 = vsyncpa %s234, 1
    %236 = vsyncpa [#allocation6], 1
    %s237 = scalar_lea.sflag [#allocation6], 1
    %238 = vsyncpa %s237, 1
    %239 = vsyncpa [#allocation4], 1
    %s240 = scalar_lea.sflag [#allocation4], 1
    %241 = vsyncpa %s240, 1

</llo_original>
